<compile_context>
chip_gen: v7x
topology: tpu7x:2x2x1
jax: 0.10.0
libtpu: 0.0.40
codegen_flags: <defaults>
</compile_context>

<pallas_src>
import functools
import math

import jax
import jax.numpy as jnp
from jax import lax
from jax.experimental import pallas as pl
from jax.experimental.pallas import tpu as pltpu


def _round_up(n: int, m: int) -> int:
    return ((n + m - 1) // m) * m


def _cdiv(a: int, b: int) -> int:
    return (a + b - 1) // b


def _embed_onehot_kernel(ids_ref, table_ref, o_ref, *, scale):
    """One grid step: o = onehot(ids) @ table * sqrt(d_model).

    ids_ref   : VMEM (T, 1) int32          -- token ids for this block
    table_ref : VMEM (Vp, D)               -- full table, resident across steps
    o_ref     : VMEM (T, D)                -- lane-dense output block
    """
    T = ids_ref.shape[0]
    Vp = table_ref.shape[0]
    ids = ids_ref[...]                                       # (T, 1) int32
    cols = lax.broadcasted_iota(jnp.int32, (T, Vp), 1)       # column = vocab id
    # (T, Vp) one-hot; an out-of-range id matches no column -> zero output row.
    onehot = (ids == cols).astype(table_ref.dtype)
    acc = jnp.dot(onehot, table_ref[...], preferred_element_type=jnp.float32)
    o_ref[...] = (acc * scale).astype(o_ref.dtype)           # one scale + one cast per block


def _vmem_ceiling_bytes() -> int:
    """Per-generation scoped-VMEM ceiling (v5e/v6e ~96-100 MiB, v7x ~48 MiB)."""
    try:
        cap = pltpu.get_tpu_info().vmem_capacity_bytes
    except Exception:
        return 64 * 1024 * 1024
    return int(min(100 * 1024 * 1024, cap * 3 // 4))


def input_embeddings_forward(token_ids, embedding_table, *,
                             target_block_bytes=2 << 20,
                             onehot_bytes_cap=4 << 20):
    """Mirrors InputEmbeddings.forward: embedding(x) * sqrt(d_model).

    token_ids       : int array, any shape (e.g. (B, S))
    embedding_table : (vocab_size, d_model) float array
    returns         : token_ids.shape + (d_model,), dtype of the table
    """
    V, D = embedding_table.shape
    out_dtype = embedding_table.dtype
    scale = math.sqrt(D)

    orig_shape = token_ids.shape
    flat = token_ids.reshape(-1).astype(jnp.int32)
    N = int(flat.shape[0])
    if N == 0:
        return jnp.zeros((*orig_shape, D), out_dtype)

    itemsize = jnp.dtype(out_dtype).itemsize
    # Packed-sublane multiple: 8 for 4-byte, 16 for 2-byte, 32 for 1-byte dtypes.
    sub = max(8, 32 // itemsize)

    # Pad the vocab axis to a lane/MXU-tile multiple; padded rows are zero and
    # never selected (valid ids are < V).
    Vp = _round_up(V, 128)
    table = embedding_table
    if Vp != V:
        table = jnp.pad(table, ((0, Vp - V), (0, 0)))

    # Rows per output block: aim for >= target_block_bytes per block (amortize
    # per-grid-step pipeline overhead), cap so the (T, Vp) one-hot intermediate
    # stays modest, round to the dtype's packed-sublane multiple.
    t_out = max(target_block_bytes // (D * itemsize), sub)
    t_oh = max(onehot_bytes_cap // (Vp * itemsize), sub)
    T = _round_up(min(t_out, t_oh, _round_up(N, sub)), sub)
    # Keep >= 2 grid steps when possible so the "parallel" axis feeds both
    # TensorCores on megacore parts (v7x); with G == 1 one core would idle.
    if _round_up(N, T) // T < 2 and N > sub:
        T = _round_up(_cdiv(N, 2), sub)

    Np = _round_up(N, T)
    if Np != N:
        # Pad with token id 0 (valid row); padded rows are sliced off below.
        flat = jnp.concatenate([flat, jnp.zeros((Np - N,), jnp.int32)])
    G = Np // T
    ids2d = flat.reshape(Np, 1)

    # VMEM budget: table (x2 in case the invariant input is double-buffered),
    # double-buffered ids/output blocks, one-hot + f32 accumulator, margin.
    table_bytes = Vp * D * itemsize
    needed = (2 * table_bytes + 2 * T * D * itemsize + 2 * T * 4
              + T * Vp * itemsize + T * D * 4 + (8 << 20))
    vmem_limit = int(min(_vmem_ceiling_bytes(), max(32 << 20, needed)))

    kernel = functools.partial(_embed_onehot_kernel, scale=scale)

    out = pl.pallas_call(
        kernel,
        out_shape=jax.ShapeDtypeStruct((Np, D), out_dtype),
        grid=(G,),
        in_specs=[
            # Per-block token ids, laid out along sublanes.
            pl.BlockSpec((T, 1), lambda i: (i, 0)),
            # Whole (padded) table; constant index_map -> single HBM fetch,
            # resident in VMEM across all grid steps.
            pl.BlockSpec((Vp, D), lambda i: (0, 0)),
        ],
        out_specs=pl.BlockSpec((T, D), lambda i: (i, 0)),
        compiler_params=pltpu.CompilerParams(
            dimension_semantics=("parallel",),   # megacore sharding on v7x
            vmem_limit_bytes=vmem_limit,
        ),
    )(ids2d, table)

    out = out[:N]
    return out.reshape(*orig_shape, D)


if __name__ == "__main__":
    key = jax.random.PRNGKey(0)
    k_tbl, k_ids = jax.random.split(key)

    # Small shapes consistent with the module: batch=2, seq=8, d_model=128
    # (lane-dense), vocab_size=1000.
    d_model, vocab_size = 128, 1000
    B, S = 2, 8

    # Demo table values are snapped to bf16 so the correctness check is exact
    # regardless of how many bf16 passes the MXU uses for the f32 matmul.
    embedding_table = (
        (jax.random.normal(k_tbl, (vocab_size, d_model), dtype=jnp.float32) * 0.02)
        .astype(jnp.bfloat16)
        .astype(jnp.float32)
    )
    token_ids = jax.random.randint(
        k_ids, (B, S), minval=0, maxval=vocab_size, dtype=jnp.int32
    )

    out = input_embeddings_forward(token_ids, embedding_table)
    out = jax.block_until_ready(out)

    # Plain-JAX reference: gather then scale by sqrt(d_model).
    ref = embedding_table[token_ids.reshape(-1)].reshape(B, S, d_model) * math.sqrt(
        d_model
    )

    assert out.shape == (B, S, d_model), f"bad shape {out.shape}"
    assert out.dtype == embedding_table.dtype, f"bad dtype {out.dtype}"
    assert jnp.allclose(out, ref, atol=1e-5, rtol=1e-5), "mismatch vs reference"

    print("KERNEL_OK")
</pallas_src>

<mosaic_0001>
module attributes {stable_mosaic.version = 11 : i64} {
  func.func @_embed_onehot_kernel(%arg0: i32, %arg1: memref<8x1xi32, #tpu.memory_space<vmem>>, %arg2: memref<1024x128xf32, #tpu.memory_space<vmem>>, %arg3: memref<8x128xf32, #tpu.memory_space<vmem>>) attributes {dimension_semantics = [#tpu.dimension_semantics<parallel>], iteration_bounds = array<i64: 2>, scalar_prefetch = 0 : i64, scratch_operands = 0 : i64, tpu.core_type = #tpu.core_type<tc>, window_params = [{transform_indices = @transform_0, window_bounds = array<i64: 8, 1>}, {pipeline_mode = #tpu.pipeline_mode<synchronous>, transform_indices = @transform_1, window_bounds = array<i64: 1024, 128>}, {transform_indices = @transform_2, window_bounds = array<i64: 8, 128>}]} {
    %c0 = arith.constant 0 : index
    %c0_0 = arith.constant 0 : index
    %0 = vector.load %arg1[%c0, %c0_0] : memref<8x1xi32, #tpu.memory_space<vmem>>, vector<8x1xi32>
    %1 = tpu.iota {dimensions = array<i32: 1>} : vector<8x1024xi32>
    %2 = vector.broadcast %0 : vector<8x1xi32> to vector<8x1024xi32>
    %3 = arith.cmpi eq, %2, %1 : vector<8x1024xi32>
    %4 = arith.extui %3 : vector<8x1024xi1> to vector<8x1024xi32>
    %5 = arith.sitofp %4 : vector<8x1024xi32> to vector<8x1024xf32>
    %c0_1 = arith.constant 0 : index
    %c0_2 = arith.constant 0 : index
    %6 = vector.load %arg2[%c0_1, %c0_2] : memref<1024x128xf32, #tpu.memory_space<vmem>>, vector<1024x128xf32>
    %cst = arith.constant dense<0.000000e+00> : vector<8x128xf32>
    %7 = tpu.matmul %5, %6, %cst {dimension_numbers = #tpu.dot_dimension_numbers<[1], [0], [0], [1], [0, 0, 1, 1], [], []>} : vector<8x1024xf32>, vector<1024x128xf32>, vector<8x128xf32> -> vector<8x128xf32>
    %cst_3 = arith.constant 11.3137083 : f32
    %8 = vector.broadcast %cst_3 : f32 to vector<8x128xf32>
    %9 = arith.mulf %7, %8 : vector<8x128xf32>
    %c0_4 = arith.constant 0 : index
    %c0_5 = arith.constant 0 : index
    %10 = vector.load %arg3[%c0_4, %c0_5] : memref<8x128xf32, #tpu.memory_space<vmem>>, vector<8x128xf32>
    tpu.vector_store %arg3[%c0_4, %c0_5], %9 {strides = array<i32>} : memref<8x128xf32, #tpu.memory_space<vmem>>, vector<8x128xf32>,
    return
  }
  func.func @transform_0(%arg0: i32) -> (i32, i32) {
    %c0_i32 = arith.constant 0 : i32
    %c0_i32_0 = arith.constant 0 : i32
    return %arg0, %c0_i32 : i32, i32
  }
  func.func @transform_1(%arg0: i32) -> (i32, i32) {
    %c0_i32 = arith.constant 0 : i32
    %c0_i32_0 = arith.constant 0 : i32
    %c0_i32_1 = arith.constant 0 : i32
    return %c0_i32, %c0_i32_0 : i32, i32
  }
  func.func @transform_2(%arg0: i32) -> (i32, i32) {
    %c0_i32 = arith.constant 0 : i32
    %c0_i32_0 = arith.constant 0 : i32
    return %arg0, %c0_i32 : i32, i32
  }
}

</mosaic_0001>

<llo_original>
// kernel: tpu_custom_call.1
$region0: #{tpu_custom_call.1}
  #allocation0 [shape = 'u32[]', space=smem, size = 0x4, offset = 0x4, fixed_abs, tag = 'smem constant byte address 0x4 - core index']
  #allocation1 [shape = 'u32[144,128]{1,0:T(1,128)}', space=vmem, size = 0x12000, scoped, tag = 'internal scratch']
  %s0 = inlined_call_operand.vmem [shape: s32[16,1], index: 0, kind: input, shape index: {}]
  %s1 = inlined_call_operand.hbm [shape: f32[1024,128], index: 1, kind: input, shape index: {}]
  %s2 = inlined_call_operand.hbm [shape: f32[16,128], index: 2, kind: output, shape index: {}]
  %s3 = sld [smem:[#allocation0]]
  $region45: #{tpu_custom_call.1} parent=0
    _
  %s5 = ssub.s32 1, %s3
  %s6 = scalar_select 0, %s5, %s3
  $region1: #{tpu_custom_call.1} parent=0
    #allocation2 [shape = 'u8[524288]{0}', space=vmem, size = 0x80000, scoped, tag = 'input window, operand 1, single buffered']
    #allocation3 [shape = 's32[2]{0}', space=sflag, size = 0x8, scoped, tag = 'scoped memory for tpu_custom_call.1']
    #allocation4 [shape = 's32[2]{0}', space=sflag, size = 0x8, scoped, tag = 'scoped memory for tpu_custom_call.1']
    #allocation5 [shape = 'u8[8192]{0}', space=vmem, size = 0x2000, scoped, tag = 'output window, operand 0']
    %7 = vsyncpa [#allocation3], 0
    %8 = vsyncpa [#allocation4], 0
    %s9 = scalar_lea.sflag [#allocation4], 1
    %10 = vsyncpa %s9, 0
    loop: start=0, step=1, limit=4
    $region2: #{tpu_custom_call.1} parent=1 // loop_pre_header
      _
    $region3: #{tpu_custom_call.1} parent=1 // loop_header
      %s12 = sphi 0, %s16
      %p13 = scmp.ge.s32.totalorder %s12, 4
      %s22 = sphi 0, %s24
      %s25 = sphi 0, %s22
      %s26 = sphi 0, %s25
      %s42 = sphi 0, %s26
      %s46 = sphi 0, %s46
      %s48 = sphi 0, %s46
      %s49 = sphi 0, %s48
      %s63 = sphi 0, %s49
      %s69 = sphi 0, %s71
      %s72 = sphi 0, %s69
      %s73 = sphi 0, %s72
      %s89 = sphi 0, %s73
    $region4: #{tpu_custom_call.1} parent=1 // loop_header_branch
      %15 = sbr.rel (%p13) target = $region8
    $region5: #{tpu_custom_call.1} parent=1 // loop_body
      %s17 = ssub.s32 %s12, 1
      %s18 = ssub.s32 %s12, 2
      %s19 = sadd.s32 %s12, 1
      %s20 = ssub.s32 %s12, %s19
      %p21 = scmp.eq.s32.totalorder %s20, 0
      %s23 = sadd.s32 %s22, 1
      %s24 = scalar_select %p21, %s22, %s23
      %p27 = pneg %p21
      %p28 = scmp.eq.s32.totalorder %s12, 1
      %p29 = por %p27, %p28
      %p30 = scmp.ne.s32.totalorder %s22, %s25
      %p31 = scmp.eq.s32.totalorder %s12, 0
      %p32 = por %p30, %p31
      %p33 = scmp.ne.s32.totalorder %s22, %s25
      %p34 = scmp.eq.s32.totalorder %s17, 1
      %p35 = por %p33, %p34
      %p36 = scmp.ne.s32.totalorder %s25, %s26
      %p37 = scmp.eq.s32.totalorder %s17, 0
      %p38 = por %p36, %p37
      %p39 = scmp.ne.s32.totalorder %s25, %s26
      %p40 = scmp.eq.s32.totalorder %s18, 1
      %p41 = por %p39, %p40
      %p43 = scmp.ne.s32.totalorder %s26, %s42
      %p44 = scmp.eq.s32.totalorder %s18, 0
      %p45 = por %p43, %p44
      %s47 = sadd.s32 %s46, 1
      %p50 = scmp.eq.s32.totalorder %s12, 1
      %p51 = scmp.ne.s32.totalorder %s46, %s48
      %p52 = scmp.eq.s32.totalorder %s12, 0
      %p53 = por %p51, %p52
      %p54 = scmp.ne.s32.totalorder %s46, %s48
      %p55 = scmp.eq.s32.totalorder %s17, 1
      %p56 = por %p54, %p55
      %p57 = scmp.ne.s32.totalorder %s48, %s49
      %p58 = scmp.eq.s32.totalorder %s17, 0
      %p59 = por %p57, %p58
      %p60 = scmp.ne.s32.totalorder %s48, %s49
      %p61 = scmp.eq.s32.totalorder %s18, 1
      %p62 = por %p60, %p61
      %p64 = scmp.ne.s32.totalorder %s49, %s63
      %p65 = scmp.eq.s32.totalorder %s18, 0
      %p66 = por %p64, %p65
      %s67 = ssub.s32 %s12, %s19
      %p68 = scmp.eq.s32.totalorder %s67, 0
      %s70 = sadd.s32 %s69, 1
      %s71 = scalar_select %p68, %s69, %s70
      %p74 = pneg %p68
      %p75 = scmp.eq.s32.totalorder %s12, 1
      %p76 = por %p74, %p75
      %p77 = scmp.ne.s32.totalorder %s69, %s72
      %p78 = scmp.eq.s32.totalorder %s12, 0
      %p79 = por %p77, %p78
      %p80 = scmp.ne.s32.totalorder %s69, %s72
      %p81 = scmp.eq.s32.totalorder %s17, 1
      %p82 = por %p80, %p81
      %p83 = scmp.ne.s32.totalorder %s72, %s73
      %p84 = scmp.eq.s32.totalorder %s17, 0
      %p85 = por %p83, %p84
      %p86 = scmp.ne.s32.totalorder %s72, %s73
      %p87 = scmp.eq.s32.totalorder %s18, 1
      %p88 = por %p86, %p87
      %p90 = scmp.ne.s32.totalorder %s73, %s89
      %p91 = scmp.eq.s32.totalorder %s18, 0
      %p92 = por %p90, %p91
      %p93 = scmp.le.s32.totalorder 1, %s12
      %p94 = scmp.lt.s32.totalorder %s12, 3
      %p95 = pnand %p93, %p94
      %p96 = pneg %p95
      // Predicated region
      $region9: #{tpu_custom_call.1} parent=5 // pred_check
        _
      $region10: #{tpu_custom_call.1} parent=5 // pred_check_branch
        %98 = sbr.rel (%p95) target = $region12
      $region11: #{tpu_custom_call.1} parent=5 // pred_region
        %s99 = ssub.s32 %s12, 1
        // Predicated region
        $region13: #{tpu_custom_call.1} parent=11 // pred_check
          %p100 = pneg %p59
        $region14: #{tpu_custom_call.1} parent=11 // pred_check_branch
          %102 = sbr.rel (%p100) target = $region16
        $region15: #{tpu_custom_call.1} parent=11 // pred_region
          %s104 = ssub.s32 16384, 16384
          %105 = vsyncadd [#allocation3], %s104
          %s106 = sshll.u32 [#allocation2], 4
          %s107 = int_to_ptr.vmem [resolvable:$true] %s106
          %112 = dma.hbm_to_vmem [thread:$0]  %s1, 16384, %s107, [#allocation3], 128, 128, 8
        $region16: #{tpu_custom_call.1} parent=11 // pred_fallthru
          _
      $region12: #{tpu_custom_call.1} parent=5 // pred_fallthru
        _
      %p113 = scmp.lt.s32.totalorder %s12, 2
      // Predicated region
      $region17: #{tpu_custom_call.1} parent=5 // pred_check
        %p114 = pneg %p113
      $region18: #{tpu_custom_call.1} parent=5 // pred_check_branch
        %116 = sbr.rel (%p114) target = $region20
      $region19: #{tpu_custom_call.1} parent=5 // pred_region
        // Predicated region
        $region21: #{tpu_custom_call.1} parent=19 // pred_check
          %p117 = pneg %p32
        $region22: #{tpu_custom_call.1} parent=19 // pred_check_branch
          %119 = sbr.rel (%p117) target = $region24
        $region23: #{tpu_custom_call.1} parent=19 // pred_region
          %p120 = scmp.lt.s32.totalorder %s12, 1
          %s121 = scalar_select %p120, %s12, 1
          %s122 = smul.addr %s121, 8
          %s123 = scalar_lea.vmem %s0, %s122
        $region24: #{tpu_custom_call.1} parent=19 // pred_fallthru
          _
      $region20: #{tpu_custom_call.1} parent=5 // pred_fallthru
        _
      %p124 = scmp.le.s32.totalorder 1, %s12
      %p125 = scmp.lt.s32.totalorder %s12, 3
      %p126 = pnand %p124, %p125
      %p127 = pneg %p126
      // Predicated region
      $region25: #{tpu_custom_call.1} parent=5 // pred_check
        _
      $region26: #{tpu_custom_call.1} parent=5 // pred_check_branch
        %129 = sbr.rel (%p126) target = $region28
      $region27: #{tpu_custom_call.1} parent=5 // pred_region
        %s130 = ssub.s32 %s12, 1
        // Predicated region
        $region29: #{tpu_custom_call.1} parent=27 // pred_check
          %p131 = pneg %p59
        $region30: #{tpu_custom_call.1} parent=27 // pred_check_branch
          %133 = sbr.rel (%p131) target = $region32
        $region31: #{tpu_custom_call.1} parent=27 // pred_region
          %134 = dma.done [#allocation3], 16384
        $region32: #{tpu_custom_call.1} parent=27 // pred_fallthru
          _
        %p135 = scmp.lt.s32.totalorder %s17, 1
        %s136 = scalar_select %p135, %s17, 1
        %s137 = smul.addr %s136, 8
        %s138 = scalar_lea.vmem %s0, %s137
        %p139 = pneg %p38
        %p140 = pneg %p35
        %p141 = pneg %p59
        %p142 = pneg %p56
        %p143 = pneg %p85
        %p144 = pneg %p82
        %s145 = sand.u32 %s72, 1
        %s146 = scalar_lea.sflag [#allocation4], %s145
        %s147 = sand.u32 %s72, 1
        %s148 = smul.addr %s147, 8
        %s149 = scalar_lea.vmem [#allocation5], %s148
        %p150 = scmp.lt.s32.totalorder %s17, 1
        %s151 = scalar_select %p150, %s17, 1
        %s152 = smul.addr %s151, 8
        %s153 = scalar_lea.vmem %s0, %s152
        %v154 = vld [vmem:[%s153] sm:$0xff]
        %v155 = vlaneseq
        %v156 = vand.u32 %v155, 127
        %v157 = vadd.s32 %v156, 128
        %v158 = vadd.s32 %v156, 256
        %v159 = vadd.s32 %v156, 384
        %v160 = vadd.s32 %v156, 512
        %v161 = vadd.s32 %v156, 640
        %v162 = vadd.s32 %v156, 768
        %v163 = vadd.s32 %v156, 896
        %164 = vset.pattern.permute.xlu0 0
        %165 = vperm.xlu0 %164, %v154
        %v166 = vpop.permute.xlu0 %165
        %vm167 = vcmp.eq.s32.totalorder %v166, %v156
        %vm168 = vcmp.eq.s32.totalorder %v166, %v157
        %vm169 = vcmp.eq.s32.totalorder %v166, %v158
        %vm170 = vcmp.eq.s32.totalorder %v166, %v159
        %vm171 = vcmp.eq.s32.totalorder %v166, %v160
        %vm172 = vcmp.eq.s32.totalorder %v166, %v161
        %vm173 = vcmp.eq.s32.totalorder %v166, %v162
        %vm174 = vcmp.eq.s32.totalorder %v166, %v163
        %v175 = vsel %vm167, 1, 0
        %v176 = vsel %vm168, 1, 0
        %v177 = vsel %vm169, 1, 0
        %v178 = vsel %vm170, 1, 0
        %v179 = vsel %vm171, 1, 0
        %v180 = vsel %vm172, 1, 0
        %v181 = vsel %vm173, 1, 0
        %v182 = vsel %vm174, 1, 0
        %v183 = vcvt.s32.f32 %v175
        %v184 = vcvt.s32.f32 %v176
        %v185 = vcvt.s32.f32 %v177
        %v186 = vcvt.s32.f32 %v178
        %v187 = vcvt.s32.f32 %v179
        %v188 = vcvt.s32.f32 %v180
        %v189 = vcvt.s32.f32 %v181
        %v190 = vcvt.s32.f32 %v182
        %v191 = vld [vmem:[#allocation2] sm:$0xff]
        %v192 = vld [vmem:[#allocation2 + $0x8] sm:$0xff]
        %v193 = vld [vmem:[#allocation2 + $0x10] sm:$0xff]
        %v194 = vld [vmem:[#allocation2 + $0x18] sm:$0xff]
        %v195 = vld [vmem:[#allocation2 + $0x20] sm:$0xff]
        %v196 = vld [vmem:[#allocation2 + $0x28] sm:$0xff]
        %v197 = vld [vmem:[#allocation2 + $0x30] sm:$0xff]
        %v198 = vld [vmem:[#allocation2 + $0x38] sm:$0xff]
        %v199 = vld [vmem:[#allocation2 + $0x40] sm:$0xff]
        %v200 = vld [vmem:[#allocation2 + $0x48] sm:$0xff]
        %v201 = vld [vmem:[#allocation2 + $0x50] sm:$0xff]
        %v202 = vld [vmem:[#allocation2 + $0x58] sm:$0xff]
        %v203 = vld [vmem:[#allocation2 + $0x60] sm:$0xff]
        %v204 = vld [vmem:[#allocation2 + $0x68] sm:$0xff]
        %v205 = vld [vmem:[#allocation2 + $0x70] sm:$0xff]
        %v206 = vld [vmem:[#allocation2 + $0x78] sm:$0xff]
        %v207 = vld [vmem:[#allocation2 + $0x80] sm:$0xff]
        %v208 = vld [vmem:[#allocation2 + $0x88] sm:$0xff]
        %v209 = vld [vmem:[#allocation2 + $0x90] sm:$0xff]
        %v210 = vld [vmem:[#allocation2 + $0x98] sm:$0xff]
        %v211 = vld [vmem:[#allocation2 + $0xa0] sm:$0xff]
        %v212 = vld [vmem:[#allocation2 + $0xa8] sm:$0xff]
        %v213 = vld [vmem:[#allocation2 + $0xb0] sm:$0xff]
        %v214 = vld [vmem:[#allocation2 + $0xb8] sm:$0xff]
        %v215 = vld [vmem:[#allocation2 + $0xc0] sm:$0xff]
        %v216 = vld [vmem:[#allocation2 + $0xc8] sm:$0xff]
        %v217 = vld [vmem:[#allocation2 + $0xd0] sm:$0xff]
        %v218 = vld [vmem:[#allocation2 + $0xd8] sm:$0xff]
        %v219 = vld [vmem:[#allocation2 + $0xe0] sm:$0xff]
        %v220 = vld [vmem:[#allocation2 + $0xe8] sm:$0xff]
        %v221 = vld [vmem:[#allocation2 + $0xf0] sm:$0xff]
        %v222 = vld [vmem:[#allocation2 + $0xf8] sm:$0xff]
        %v223 = vld [vmem:[#allocation2 + $0x100] sm:$0xff]
        %v224 = vld [vmem:[#allocation2 + $0x108] sm:$0xff]
        %v225 = vld [vmem:[#allocation2 + $0x110] sm:$0xff]
        %v226 = vld [vmem:[#allocation2 + $0x118] sm:$0xff]
        %v227 = vld [vmem:[#allocation2 + $0x120] sm:$0xff]
        %v228 = vld [vmem:[#allocation2 + $0x128] sm:$0xff]
        %v229 = vld [vmem:[#allocation2 + $0x130] sm:$0xff]
        %v230 = vld [vmem:[#allocation2 + $0x138] sm:$0xff]
        %v231 = vld [vmem:[#allocation2 + $0x140] sm:$0xff]
        %v232 = vld [vmem:[#allocation2 + $0x148] sm:$0xff]
        %v233 = vld [vmem:[#allocation2 + $0x150] sm:$0xff]
        %v234 = vld [vmem:[#allocation2 + $0x158] sm:$0xff]
        %v235 = vld [vmem:[#allocation2 + $0x160] sm:$0xff]
        %v236 = vld [vmem:[#allocation2 + $0x168] sm:$0xff]
        %v237 = vld [vmem:[#allocation2 + $0x170] sm:$0xff]
        %v238 = vld [vmem:[#allocation2 + $0x178] sm:$0xff]
        %v239 = vld [vmem:[#allocation2 + $0x180] sm:$0xff]
        %v240 = vld [vmem:[#allocation2 + $0x188] sm:$0xff]
        %v241 = vld [vmem:[#allocation2 + $0x190] sm:$0xff]
        %v242 = vld [vmem:[#allocation2 + $0x198] sm:$0xff]
        %v243 = vld [vmem:[#allocation2 + $0x1a0] sm:$0xff]
        %v244 = vld [vmem:[#allocation2 + $0x1a8] sm:$0xff]
        %v245 = vld [vmem:[#allocation2 + $0x1b0] sm:$0xff]
        %v246 = vld [vmem:[#allocation2 + $0x1b8] sm:$0xff]
        %v247 = vld [vmem:[#allocation2 + $0x1c0] sm:$0xff]
        %v248 = vld [vmem:[#allocation2 + $0x1c8] sm:$0xff]
        %v249 = vld [vmem:[#allocation2 + $0x1d0] sm:$0xff]
        %v250 = vld [vmem:[#allocation2 + $0x1d8] sm:$0xff]
        %v251 = vld [vmem:[#allocation2 + $0x1e0] sm:$0xff]
        %v252 = vld [vmem:[#allocation2 + $0x1e8] sm:$0xff]
        %v253 = vld [vmem:[#allocation2 + $0x1f0] sm:$0xff]
        %v254 = vld [vmem:[#allocation2 + $0x1f8] sm:$0xff]
        %v255 = vld [vmem:[#allocation2 + $0x200] sm:$0xff]
        %v256 = vld [vmem:[#allocation2 + $0x208] sm:$0xff]
        %v257 = vld [vmem:[#allocation2 + $0x210] sm:$0xff]
        %v258 = vld [vmem:[#allocation2 + $0x218] sm:$0xff]
        %v259 = vld [vmem:[#allocation2 + $0x220] sm:$0xff]
        %v260 = vld [vmem:[#allocation2 + $0x228] sm:$0xff]
        %v261 = vld [vmem:[#allocation2 + $0x230] sm:$0xff]
        %v262 = vld [vmem:[#allocation2 + $0x238] sm:$0xff]
        %v263 = vld [vmem:[#allocation2 + $0x240] sm:$0xff]
        %v264 = vld [vmem:[#allocation2 + $0x248] sm:$0xff]
        %v265 = vld [vmem:[#allocation2 + $0x250] sm:$0xff]
        %v266 = vld [vmem:[#allocation2 + $0x258] sm:$0xff]
        %v267 = vld [vmem:[#allocation2 + $0x260] sm:$0xff]
        %v268 = vld [vmem:[#allocation2 + $0x268] sm:$0xff]
        %v269 = vld [vmem:[#allocation2 + $0x270] sm:$0xff]
        %v270 = vld [vmem:[#allocation2 + $0x278] sm:$0xff]
        %v271 = vld [vmem:[#allocation2 + $0x280] sm:$0xff]
        %v272 = vld [vmem:[#allocation2 + $0x288] sm:$0xff]
        %v273 = vld [vmem:[#allocation2 + $0x290] sm:$0xff]
        %v274 = vld [vmem:[#allocation2 + $0x298] sm:$0xff]
        %v275 = vld [vmem:[#allocation2 + $0x2a0] sm:$0xff]
        %v276 = vld [vmem:[#allocation2 + $0x2a8] sm:$0xff]
        %v277 = vld [vmem:[#allocation2 + $0x2b0] sm:$0xff]
        %v278 = vld [vmem:[#allocation2 + $0x2b8] sm:$0xff]
        %v279 = vld [vmem:[#allocation2 + $0x2c0] sm:$0xff]
        %v280 = vld [vmem:[#allocation2 + $0x2c8] sm:$0xff]
        %v281 = vld [vmem:[#allocation2 + $0x2d0] sm:$0xff]
        %v282 = vld [vmem:[#allocation2 + $0x2d8] sm:$0xff]
        %v283 = vld [vmem:[#allocation2 + $0x2e0] sm:$0xff]
        %v284 = vld [vmem:[#allocation2 + $0x2e8] sm:$0xff]
        %v285 = vld [vmem:[#allocation2 + $0x2f0] sm:$0xff]
        %v286 = vld [vmem:[#allocation2 + $0x2f8] sm:$0xff]
        %v287 = vld [vmem:[#allocation2 + $0x300] sm:$0xff]
        %v288 = vld [vmem:[#allocation2 + $0x308] sm:$0xff]
        %v289 = vld [vmem:[#allocation2 + $0x310] sm:$0xff]
        %v290 = vld [vmem:[#allocation2 + $0x318] sm:$0xff]
        %v291 = vld [vmem:[#allocation2 + $0x320] sm:$0xff]
        %v292 = vld [vmem:[#allocation2 + $0x328] sm:$0xff]
        %v293 = vld [vmem:[#allocation2 + $0x330] sm:$0xff]
        %v294 = vld [vmem:[#allocation2 + $0x338] sm:$0xff]
        %v295 = vld [vmem:[#allocation2 + $0x340] sm:$0xff]
        %v296 = vld [vmem:[#allocation2 + $0x348] sm:$0xff]
        %v297 = vld [vmem:[#allocation2 + $0x350] sm:$0xff]
        %v298 = vld [vmem:[#allocation2 + $0x358] sm:$0xff]
        %v299 = vld [vmem:[#allocation2 + $0x360] sm:$0xff]
        %v300 = vld [vmem:[#allocation2 + $0x368] sm:$0xff]
        %v301 = vld [vmem:[#allocation2 + $0x370] sm:$0xff]
        %v302 = vld [vmem:[#allocation2 + $0x378] sm:$0xff]
        %v303 = vld [vmem:[#allocation2 + $0x380] sm:$0xff]
        %v304 = vld [vmem:[#allocation2 + $0x388] sm:$0xff]
        %v305 = vld [vmem:[#allocation2 + $0x390] sm:$0xff]
        %v306 = vld [vmem:[#allocation2 + $0x398] sm:$0xff]
        %v307 = vld [vmem:[#allocation2 + $0x3a0] sm:$0xff]
        %v308 = vld [vmem:[#allocation2 + $0x3a8] sm:$0xff]
        %v309 = vld [vmem:[#allocation2 + $0x3b0] sm:$0xff]
        %v310 = vld [vmem:[#allocation2 + $0x3b8] sm:$0xff]
        %v311 = vld [vmem:[#allocation2 + $0x3c0] sm:$0xff]
        %v312 = vld [vmem:[#allocation2 + $0x3c8] sm:$0xff]
        %v313 = vld [vmem:[#allocation2 + $0x3d0] sm:$0xff]
        %v314 = vld [vmem:[#allocation2 + $0x3d8] sm:$0xff]
        %v315 = vld [vmem:[#allocation2 + $0x3e0] sm:$0xff]
        %v316 = vld [vmem:[#allocation2 + $0x3e8] sm:$0xff]
        %v317 = vld [vmem:[#allocation2 + $0x3f0] sm:$0xff]
        %v318 = vld [vmem:[#allocation2 + $0x3f8] sm:$0xff]
        %319 = vmatprep.subr.mxu0 0.0
        %320 = vmatpush1.msra.mxu0 %v191
        %321 = vmatprep.subr.mxu0 0.0
        %322 = vmatpush1.msra.mxu0 %v192
        %323 = vmatprep.subr.mxu0 0.0
        %324 = vmatpush1.msra.mxu0 %v193
        %325 = vmatprep.subr.mxu0 0.0
        %326 = vmatpush1.msra.mxu0 %v194
        %327 = vmatprep.subr.mxu0 0.0
        %328 = vmatpush1.msra.mxu0 %v195
        %329 = vmatprep.subr.mxu0 0.0
        %330 = vmatpush1.msra.mxu0 %v196
        %331 = vmatprep.subr.mxu0 0.0
        %332 = vmatpush1.msra.mxu0 %v197
        %333 = vmatprep.subr.mxu0 0.0
        %334 = vmatpush1.msra.mxu0 %v198
        %335 = vmatprep.subr.mxu0 0.0
        %336 = vmatpush1.msra.mxu0 %v199
        %337 = vmatprep.subr.mxu0 0.0
        %338 = vmatpush1.msra.mxu0 %v200
        %339 = vmatprep.subr.mxu0 0.0
        %340 = vmatpush1.msra.mxu0 %v201
        %341 = vmatprep.subr.mxu0 0.0
        %342 = vmatpush1.msra.mxu0 %v202
        %343 = vmatprep.subr.mxu0 0.0
        %344 = vmatpush1.msra.mxu0 %v203
        %345 = vmatprep.subr.mxu0 0.0
        %346 = vmatpush1.msra.mxu0 %v204
        %347 = vmatprep.subr.mxu0 0.0
        %348 = vmatpush1.msra.mxu0 %v205
        %349 = vmatprep.subr.mxu0 0.0
        %350 = vmatpush1.msra.mxu0 %v206
        %351 = vmatprep.subr.mxu0 0.0
        %352 = vmatpush1.msra.mxu0 %v207
        %353 = vmatprep.subr.mxu0 0.0
        %354 = vmatpush1.msra.mxu0 %v208
        %355 = vmatprep.subr.mxu0 0.0
        %356 = vmatpush1.msra.mxu0 %v209
        %357 = vmatprep.subr.mxu0 0.0
        %358 = vmatpush1.msra.mxu0 %v210
        %359 = vmatprep.subr.mxu0 0.0
        %360 = vmatpush1.msra.mxu0 %v211
        %361 = vmatprep.subr.mxu0 0.0
        %362 = vmatpush1.msra.mxu0 %v212
        %363 = vmatprep.subr.mxu0 0.0
        %364 = vmatpush1.msra.mxu0 %v213
        %365 = vmatprep.subr.mxu0 0.0
        %366 = vmatpush1.msra.mxu0 %v214
        %367 = vmatprep.subr.mxu0 0.0
        %368 = vmatpush1.msra.mxu0 %v215
        %369 = vmatprep.subr.mxu0 0.0
        %370 = vmatpush1.msra.mxu0 %v216
        %371 = vmatprep.subr.mxu0 0.0
        %372 = vmatpush1.msra.mxu0 %v217
        %373 = vmatprep.subr.mxu0 0.0
        %374 = vmatpush1.msra.mxu0 %v218
        %375 = vmatprep.subr.mxu0 0.0
        %376 = vmatpush1.msra.mxu0 %v219
        %377 = vmatprep.subr.mxu0 0.0
        %378 = vmatpush1.msra.mxu0 %v220
        %379 = vmatprep.subr.mxu0 0.0
        %380 = vmatpush1.msra.mxu0 %v221
        %381 = vmatprep.subr.mxu0 0.0
        %382 = vmatpush1.msra.mxu0 %v222
        %383 = vmatprep.mubr.f32.mxu0 %v184
        %384 = vmatmul.mubr.f32.gmra.mrb[0].mxu0 %v183
        %v385 = vpop.f32.mrb[0].mxu0
        %v386 = vadd.f32 0.0, %v385
        %v387 = vpop.f32.mrb[0].mxu0
        %388 = vdwg.mxu0
        %389 = vmatprep.subr.mxu0 0.0
        %390 = vmatpush1.msra.mxu0 %v223
        %391 = vmatprep.subr.mxu0 0.0
        %392 = vmatpush1.msra.mxu0 %v224
        %393 = vmatprep.subr.mxu0 0.0
        %394 = vmatpush1.msra.mxu0 %v225
        %395 = vmatprep.subr.mxu0 0.0
        %396 = vmatpush1.msra.mxu0 %v226
        %397 = vmatprep.subr.mxu0 0.0
        %398 = vmatpush1.msra.mxu0 %v227
        %399 = vmatprep.subr.mxu0 0.0
        %400 = vmatpush1.msra.mxu0 %v228
        %401 = vmatprep.subr.mxu0 0.0
        %402 = vmatpush1.msra.mxu0 %v229
        %403 = vmatprep.subr.mxu0 0.0
        %404 = vmatpush1.msra.mxu0 %v230
        %405 = vmatprep.subr.mxu0 0.0
        %406 = vmatpush1.msra.mxu0 %v231
        %407 = vmatprep.subr.mxu0 0.0
        %408 = vmatpush1.msra.mxu0 %v232
        %409 = vmatprep.subr.mxu0 0.0
        %410 = vmatpush1.msra.mxu0 %v233
        %411 = vmatprep.subr.mxu0 0.0
        %412 = vmatpush1.msra.mxu0 %v234
        %413 = vmatprep.subr.mxu0 0.0
        %414 = vmatpush1.msra.mxu0 %v235
        %415 = vmatprep.subr.mxu0 0.0
        %416 = vmatpush1.msra.mxu0 %v236
        %417 = vmatprep.subr.mxu0 0.0
        %418 = vmatpush1.msra.mxu0 %v237
        %419 = vmatprep.subr.mxu0 0.0
        %420 = vmatpush1.msra.mxu0 %v238
        %421 = vmatprep.subr.mxu0 0.0
        %422 = vmatpush1.msra.mxu0 %v239
        %423 = vmatprep.subr.mxu0 0.0
        %424 = vmatpush1.msra.mxu0 %v240
        %425 = vmatprep.subr.mxu0 0.0
        %426 = vmatpush1.msra.mxu0 %v241
        %427 = vmatprep.subr.mxu0 0.0
        %428 = vmatpush1.msra.mxu0 %v242
        %429 = vmatprep.subr.mxu0 0.0
        %430 = vmatpush1.msra.mxu0 %v243
        %431 = vmatprep.subr.mxu0 0.0
        %432 = vmatpush1.msra.mxu0 %v244
        %433 = vmatprep.subr.mxu0 0.0
        %434 = vmatpush1.msra.mxu0 %v245
        %435 = vmatprep.subr.mxu0 0.0
        %436 = vmatpush1.msra.mxu0 %v246
        %437 = vmatprep.subr.mxu0 0.0
        %438 = vmatpush1.msra.mxu0 %v247
        %439 = vmatprep.subr.mxu0 0.0
        %440 = vmatpush1.msra.mxu0 %v248
        %441 = vmatprep.subr.mxu0 0.0
        %442 = vmatpush1.msra.mxu0 %v249
        %443 = vmatprep.subr.mxu0 0.0
        %444 = vmatpush1.msra.mxu0 %v250
        %445 = vmatprep.subr.mxu0 0.0
        %446 = vmatpush1.msra.mxu0 %v251
        %447 = vmatprep.subr.mxu0 0.0
        %448 = vmatpush1.msra.mxu0 %v252
        %449 = vmatprep.subr.mxu0 0.0
        %450 = vmatpush1.msra.mxu0 %v253
        %451 = vmatprep.subr.mxu0 0.0
        %452 = vmatpush1.msra.mxu0 %v254
        %453 = vmatprep.mubr.f32.mxu0 %v186
        %454 = vmatmul.mubr.f32.gmra.mrb[0].mxu0 %v185
        %v455 = vpop.f32.mrb[0].mxu0
        %v456 = vadd.f32 %v386, %v455
        %v457 = vpop.f32.mrb[0].mxu0
        %458 = vdwg.mxu0
        %459 = vmatprep.subr.mxu0 0.0
        %460 = vmatpush1.msra.mxu0 %v255
        %461 = vmatprep.subr.mxu0 0.0
        %462 = vmatpush1.msra.mxu0 %v256
        %463 = vmatprep.subr.mxu0 0.0
        %464 = vmatpush1.msra.mxu0 %v257
        %465 = vmatprep.subr.mxu0 0.0
        %466 = vmatpush1.msra.mxu0 %v258
        %467 = vmatprep.subr.mxu0 0.0
        %468 = vmatpush1.msra.mxu0 %v259
        %469 = vmatprep.subr.mxu0 0.0
        %470 = vmatpush1.msra.mxu0 %v260
        %471 = vmatprep.subr.mxu0 0.0
        %472 = vmatpush1.msra.mxu0 %v261
        %473 = vmatprep.subr.mxu0 0.0
        %474 = vmatpush1.msra.mxu0 %v262
        %475 = vmatprep.subr.mxu0 0.0
        %476 = vmatpush1.msra.mxu0 %v263
        %477 = vmatprep.subr.mxu0 0.0
        %478 = vmatpush1.msra.mxu0 %v264
        %479 = vmatprep.subr.mxu0 0.0
        %480 = vmatpush1.msra.mxu0 %v265
        %481 = vmatprep.subr.mxu0 0.0
        %482 = vmatpush1.msra.mxu0 %v266
        %483 = vmatprep.subr.mxu0 0.0
        %484 = vmatpush1.msra.mxu0 %v267
        %485 = vmatprep.subr.mxu0 0.0
        %486 = vmatpush1.msra.mxu0 %v268
        %487 = vmatprep.subr.mxu0 0.0
        %488 = vmatpush1.msra.mxu0 %v269
        %489 = vmatprep.subr.mxu0 0.0
        %490 = vmatpush1.msra.mxu0 %v270
        %491 = vmatprep.subr.mxu0 0.0
        %492 = vmatpush1.msra.mxu0 %v271
        %493 = vmatprep.subr.mxu0 0.0
        %494 = vmatpush1.msra.mxu0 %v272
        %495 = vmatprep.subr.mxu0 0.0
        %496 = vmatpush1.msra.mxu0 %v273
        %497 = vmatprep.subr.mxu0 0.0
        %498 = vmatpush1.msra.mxu0 %v274
        %499 = vmatprep.subr.mxu0 0.0
        %500 = vmatpush1.msra.mxu0 %v275
        %501 = vmatprep.subr.mxu0 0.0
        %502 = vmatpush1.msra.mxu0 %v276
        %503 = vmatprep.subr.mxu0 0.0
        %504 = vmatpush1.msra.mxu0 %v277
        %505 = vmatprep.subr.mxu0 0.0
        %506 = vmatpush1.msra.mxu0 %v278
        %507 = vmatprep.subr.mxu0 0.0
        %508 = vmatpush1.msra.mxu0 %v279
        %509 = vmatprep.subr.mxu0 0.0
        %510 = vmatpush1.msra.mxu0 %v280
        %511 = vmatprep.subr.mxu0 0.0
        %512 = vmatpush1.msra.mxu0 %v281
        %513 = vmatprep.subr.mxu0 0.0
        %514 = vmatpush1.msra.mxu0 %v282
        %515 = vmatprep.subr.mxu0 0.0
        %516 = vmatpush1.msra.mxu0 %v283
        %517 = vmatprep.subr.mxu0 0.0
        %518 = vmatpush1.msra.mxu0 %v284
        %519 = vmatprep.subr.mxu0 0.0
        %520 = vmatpush1.msra.mxu0 %v285
        %521 = vmatprep.subr.mxu0 0.0
        %522 = vmatpush1.msra.mxu0 %v286
        %523 = vmatprep.mubr.f32.mxu0 %v188
        %524 = vmatmul.mubr.f32.gmra.mrb[0].mxu0 %v187
        %v525 = vpop.f32.mrb[0].mxu0
        %v526 = vadd.f32 %v456, %v525
        %v527 = vpop.f32.mrb[0].mxu0
        %528 = vdwg.mxu0
        %529 = vmatprep.subr.mxu0 0.0
        %530 = vmatpush1.msra.mxu0 %v287
        %531 = vmatprep.subr.mxu0 0.0
        %532 = vmatpush1.msra.mxu0 %v288
        %533 = vmatprep.subr.mxu0 0.0
        %534 = vmatpush1.msra.mxu0 %v289
        %535 = vmatprep.subr.mxu0 0.0
        %536 = vmatpush1.msra.mxu0 %v290
        %537 = vmatprep.subr.mxu0 0.0
        %538 = vmatpush1.msra.mxu0 %v291
        %539 = vmatprep.subr.mxu0 0.0
        %540 = vmatpush1.msra.mxu0 %v292
        %541 = vmatprep.subr.mxu0 0.0
        %542 = vmatpush1.msra.mxu0 %v293
        %543 = vmatprep.subr.mxu0 0.0
        %544 = vmatpush1.msra.mxu0 %v294
        %545 = vmatprep.subr.mxu0 0.0
        %546 = vmatpush1.msra.mxu0 %v295
        %547 = vmatprep.subr.mxu0 0.0
        %548 = vmatpush1.msra.mxu0 %v296
        %549 = vmatprep.subr.mxu0 0.0
        %550 = vmatpush1.msra.mxu0 %v297
        %551 = vmatprep.subr.mxu0 0.0
        %552 = vmatpush1.msra.mxu0 %v298
        %553 = vmatprep.subr.mxu0 0.0
        %554 = vmatpush1.msra.mxu0 %v299
        %555 = vmatprep.subr.mxu0 0.0
        %556 = vmatpush1.msra.mxu0 %v300
        %557 = vmatprep.subr.mxu0 0.0
        %558 = vmatpush1.msra.mxu0 %v301
        %559 = vmatprep.subr.mxu0 0.0
        %560 = vmatpush1.msra.mxu0 %v302
        %561 = vmatprep.subr.mxu0 0.0
        %562 = vmatpush1.msra.mxu0 %v303
        %563 = vmatprep.subr.mxu0 0.0
        %564 = vmatpush1.msra.mxu0 %v304
        %565 = vmatprep.subr.mxu0 0.0
        %566 = vmatpush1.msra.mxu0 %v305
        %567 = vmatprep.subr.mxu0 0.0
        %568 = vmatpush1.msra.mxu0 %v306
        %569 = vmatprep.subr.mxu0 0.0
        %570 = vmatpush1.msra.mxu0 %v307
        %571 = vmatprep.subr.mxu0 0.0
        %572 = vmatpush1.msra.mxu0 %v308
        %573 = vmatprep.subr.mxu0 0.0
        %574 = vmatpush1.msra.mxu0 %v309
        %575 = vmatprep.subr.mxu0 0.0
        %576 = vmatpush1.msra.mxu0 %v310
        %577 = vmatprep.subr.mxu0 0.0
        %578 = vmatpush1.msra.mxu0 %v311
        %579 = vmatprep.subr.mxu0 0.0
        %580 = vmatpush1.msra.mxu0 %v312
        %581 = vmatprep.subr.mxu0 0.0
        %582 = vmatpush1.msra.mxu0 %v313
        %583 = vmatprep.subr.mxu0 0.0
        %584 = vmatpush1.msra.mxu0 %v314
        %585 = vmatprep.subr.mxu0 0.0
        %586 = vmatpush1.msra.mxu0 %v315
        %587 = vmatprep.subr.mxu0 0.0
        %588 = vmatpush1.msra.mxu0 %v316
        %589 = vmatprep.subr.mxu0 0.0
        %590 = vmatpush1.msra.mxu0 %v317
        %591 = vmatprep.subr.mxu0 0.0
        %592 = vmatpush1.msra.mxu0 %v318
        %593 = vmatprep.mubr.f32.mxu0 %v190
        %594 = vmatmul.mubr.f32.gmra.mrb[0].mxu0 %v189
        %v595 = vpop.f32.mrb[0].mxu0
        %v596 = vadd.f32 %v526, %v595
        %v597 = vpop.f32.mrb[0].mxu0
        %598 = vdwg.mxu0
        %v599 = vmul.f32 %v596, 11.313708
        %600 = vst [vmem:[%s149] sm:$0xff] %v599
        %s601 = sand.u32 %s72, 1
        %s602 = scalar_lea.sflag [#allocation4], %s601
        %s603 = sand.u32 %s72, 1
        %s604 = smul.addr %s603, 8
        %s605 = scalar_lea.vmem [#allocation5], %s604
        // Predicated region
        $region33: #{tpu_custom_call.1} parent=27 // pred_check
          %p606 = pneg %p82
        $region34: #{tpu_custom_call.1} parent=27 // pred_check_branch
          %608 = sbr.rel (%p606) target = $region36
        $region35: #{tpu_custom_call.1} parent=27 // pred_region
          %s610 = ssub.s32 128, 128
          %611 = vsyncadd %s602, %s610
          %s612 = smul.addr %s17, 128
          %s613 = scalar_lea.hbm %s2, %s612
          %s615 = sshll.u32 %s605, 4
          %s616 = int_to_ptr.vmem [resolvable:$true] %s615
          %618 = dma.vmem_to_hbm [thread:$0]  %s616, 128, %s613, %s602
        $region36: #{tpu_custom_call.1} parent=27 // pred_fallthru
          _
      $region28: #{tpu_custom_call.1} parent=5 // pred_fallthru
        _
      %p619 = scmp.le.s32.totalorder 2, %s12
      // Predicated region
      $region37: #{tpu_custom_call.1} parent=5 // pred_check
        %p620 = pneg %p619
      $region38: #{tpu_custom_call.1} parent=5 // pred_check_branch
        %622 = sbr.rel (%p620) target = $region40
      $region39: #{tpu_custom_call.1} parent=5 // pred_region
        %s623 = ssub.s32 %s12, 2
        // Predicated region
        $region41: #{tpu_custom_call.1} parent=39 // pred_check
          %p624 = pneg %p88
        $region42: #{tpu_custom_call.1} parent=39 // pred_check_branch
          %626 = sbr.rel (%p624) target = $region44
        $region43: #{tpu_custom_call.1} parent=39 // pred_region
          %s627 = sand.u32 %s73, 1
          %s628 = scalar_lea.sflag [#allocation4], %s627
          %s629 = sand.u32 %s73, 1
          %s630 = smul.addr %s629, 8
          %s631 = scalar_lea.vmem [#allocation5], %s630
          %632 = dma.done %s628, 128
        $region44: #{tpu_custom_call.1} parent=39 // pred_fallthru
          _
      $region40: #{tpu_custom_call.1} parent=5 // pred_fallthru
        _
    $region6: #{tpu_custom_call.1} parent=1 // loop_footer
      %s16 = sadd.s32 1, %s12
    $region7: #{tpu_custom_call.1} parent=1 // loop_footer_branch
      %11 = sbr.rel target = $region3
    $region8: #{tpu_custom_call.1} parent=1 // loop_exit
      _
    %633 = vsyncpa [#allocation3], 1
    %s634 = scalar_lea.sflag [#allocation3], 1
    %635 = vsyncpa %s634, 1
    %636 = vsyncpa [#allocation4], 1
    %s637 = scalar_lea.sflag [#allocation4], 1
    %638 = vsyncpa %s637, 1

</llo_original>
